<compile_context>
chip_gen: v7x
topology: tpu7x:2x2x1
jax: 0.10.0
libtpu: 0.0.40
codegen_flags: <defaults>
</compile_context>

<pallas_src>
import jax
import jax.numpy as jnp
from jax.experimental import pallas as pl
from jax.experimental.pallas import tpu as pltpu


def _round_up(v, m):
    return ((v + m - 1) // m) * m


def _pick_tile(full, max_tile, align=128):
    """Largest multiple of `align` that divides `full` and is <= max_tile."""
    best = align
    t = align
    while t <= min(full, max_tile):
        if full % t == 0:
            best = t
        t += align
    return best


def _vmem_limit_bytes():
    """Half of the physical per-core VMEM, capped at 64 MiB.

    -> 64 MiB on v5e/v6e (128 MiB physical), 32 MiB on v7x (64 MiB physical).
    Falls back to a safe 32 MiB if the query is unavailable.
    """
    try:
        cap = int(pltpu.get_tpu_info().vmem_capacity_bytes)
    except Exception:
        return 32 * 1024 * 1024
    return min(cap // 2, 64 * 1024 * 1024)


def _fc_prelu_kernel(alpha_ref, x_ref, w_ref, b_ref, o_ref):
    """One (tm, tn) f32 output tile, accumulated in place over the K grid axis."""
    k = pl.program_id(2)
    partial = jnp.dot(x_ref[...], w_ref[...], preferred_element_type=jnp.float32)

    @pl.when(k == 0)
    def _():                                   # init: first partial + bias
        o_ref[...] = partial + b_ref[...]

    @pl.when(k > 0)
    def _():                                   # accumulate remaining K blocks
        o_ref[...] += partial

    @pl.when(k == pl.num_programs(2) - 1)
    def _():                                   # epilogue: PReLU (f32, VPU)
        y = o_ref[...]
        o_ref[...] = jnp.where(y > 0, y, alpha_ref[0] * y)


def prepare_fc_params(weight, bias, *, compute_dtype=jnp.float32):
    """One-time parameter setup (kept OUT of the per-call hot path).

    weight: (outplanes, inplanes)  -- torch nn.Linear layout
    bias:   (outplanes,)
    Returns:
      w_t_padded:  (round_up(inplanes,128), round_up(outplanes,128)) compute_dtype
      bias_padded: (1, round_up(outplanes,128)) float32
    """
    outplanes, inplanes = weight.shape
    k_full = _round_up(inplanes, 128)
    n_full = _round_up(outplanes, 128)
    w_t = jnp.asarray(weight).T
    if (k_full, n_full) != (inplanes, outplanes):
        w_t = jnp.pad(w_t, ((0, k_full - inplanes), (0, n_full - outplanes)))
    w_t = w_t.astype(compute_dtype)
    b = jnp.asarray(bias, jnp.float32).reshape(1, outplanes)
    if n_full != outplanes:
        b = jnp.pad(b, ((0, 0), (0, n_full - outplanes)))
    return w_t, b


def fc_prelu(x, w_t_padded, bias_padded, alpha, outplanes, *,
             tile_m=256, tile_n=512, tile_k=2048,
             min_pallas_work=1_000_000, force_pallas=False):
    """Forward of FC: PReLU(Linear(x)). Output is float32.

    x:            (B, inplanes) float
    w_t_padded:   (k_full, n_full) from prepare_fc_params (transposed, 128-padded,
                  possibly bf16)
    bias_padded:  (1, n_full) float32 from prepare_fc_params
    alpha:        scalar (nn.PReLU() single shared parameter)
    outplanes:    logical (unpadded) output width
    """
    B, inplanes = x.shape
    k_full, n_full = w_t_padded.shape
    assert k_full == _round_up(inplanes, 128), "weight not prepared for this inplanes"
    assert n_full >= outplanes

    alpha_arr = jnp.asarray(alpha, jnp.float32).reshape(-1)
    # TODO(synk): only nn.PReLU(num_parameters=1) is supported; per-channel alpha
    # would need a (1, tn) VMEM tile like the bias.
    assert alpha_arr.size == 1, "only single-parameter PReLU supported"

    compute_dtype = w_t_padded.dtype

    # ---- tiny-problem fallback: fixed pallas_call/DMA setup cost dominates. ----
    if (not force_pallas) and B * inplanes * outplanes < min_pallas_work:
        xk = x if inplanes == k_full else jnp.pad(x, ((0, 0), (0, k_full - inplanes)))
        y = jnp.dot(xk.astype(compute_dtype), w_t_padded,
                    preferred_element_type=jnp.float32)
        y = y[:, :outplanes] + bias_padded[0, :outplanes]
        return jnp.where(y > 0, y, alpha_arr[0] * y)

    # ---- tile selection (8/128 aligned; tn/tk exactly divide the padded W). ----
    tm = min(tile_m, _round_up(B, 8))
    m_pad = _round_up(B, tm)
    m_blocks = m_pad // tm
    tn = _pick_tile(n_full, tile_n)
    if m_blocks == 1 and n_full >= 256:
        # Guarantee >= 2 "parallel" output blocks so both v7x TensorCores get work.
        tn = min(tn, _pick_tile(n_full, n_full // 2))
    tk = _pick_tile(k_full, tile_k)
    n_blocks = n_full // tn
    k_blocks = k_full // tk

    # ---- per-call padding: only x (weight/bias were padded at setup time). ----
    x_p = x
    if (m_pad, k_full) != (B, inplanes):
        x_p = jnp.pad(x, ((0, m_pad - B), (0, k_full - inplanes)))
    x_p = x_p.astype(compute_dtype)

    itemsize = jnp.dtype(compute_dtype).itemsize
    cost = pl.CostEstimate(
        flops=2 * m_pad * n_full * k_full,
        transcendentals=0,
        bytes_accessed=(itemsize * m_pad * k_full * n_blocks      # x re-read per N block
                        + itemsize * k_full * n_full * m_blocks   # W re-read per M block
                        + 4 * m_pad * n_full),                    # f32 output
    )

    out = pl.pallas_call(
        _fc_prelu_kernel,
        out_shape=jax.ShapeDtypeStruct((m_pad, n_full), jnp.float32),
        grid_spec=pltpu.PrefetchScalarGridSpec(
            num_scalar_prefetch=0,
            grid=(m_blocks, n_blocks, k_blocks),
            in_specs=[
                pl.BlockSpec(memory_space=pltpu.SMEM),            # alpha scalar
                pl.BlockSpec((tm, tk), lambda i, j, k: (i, k)),   # x tile
                pl.BlockSpec((tk, tn), lambda i, j, k: (k, j)),   # W^T tile
                pl.BlockSpec((1, tn), lambda i, j, k: (0, j)),    # bias tile
            ],
            out_specs=pl.BlockSpec((tm, tn), lambda i, j, k: (i, j)),
        ),
        compiler_params=pltpu.CompilerParams(
            dimension_semantics=("parallel", "parallel", "arbitrary"),
            vmem_limit_bytes=_vmem_limit_bytes(),
        ),
        cost_estimate=cost,
    )(alpha_arr, x_p, w_t_padded, bias_padded)

    if (m_pad, n_full) != (B, outplanes):
        out = out[:B, :outplanes]
    return out


def fc_prelu_reference(x, weight, bias, alpha, compute_dtype=jnp.float32):
    """Plain-JAX reference using the original torch-layout weight."""
    y = jnp.dot(x.astype(compute_dtype), weight.T.astype(compute_dtype),
                preferred_element_type=jnp.float32) + bias
    return jnp.where(y > 0, y, jnp.float32(alpha) * y)


def _make_params(key, inplanes, outplanes):
    """Deterministic synthetic params mimicking nn.Linear init conventions."""
    kw, kb = jax.random.split(key)
    bound = 1.0 / (inplanes ** 0.5)
    weight = jax.random.uniform(kw, (outplanes, inplanes), jnp.float32,
                                minval=-bound, maxval=bound)
    bias = jax.random.uniform(kb, (outplanes,), jnp.float32,
                              minval=-bound, maxval=bound)
    return weight, bias


if __name__ == "__main__":
    key = jax.random.PRNGKey(0)
    alpha = jnp.float32(0.25)   # nn.PReLU() default: single param, init 0.25

    # Case 1: module's toy shape (batch=8, inplanes=32, outplanes=64), forced
    # through the Pallas path (single-block grid).
    k1, k2, key = jax.random.split(key, 3)
    x1 = jax.random.normal(k1, (8, 32), jnp.float32)
    w1, b1 = _make_params(k2, 32, 64)
    w1_p, b1_p = prepare_fc_params(w1, b1)                 # one-time setup
    out1 = jax.block_until_ready(
        fc_prelu(x1, w1_p, b1_p, alpha, 64, force_pallas=True))
    ref1 = fc_prelu_reference(x1, w1, b1, alpha)
    assert out1.shape == (8, 64)
    assert jnp.allclose(out1, ref1, atol=1e-5, rtol=1e-5), "mismatch (case 1)"

    # Case 2: ragged non-128-aligned shapes, multi-block M/N/K grid + padding.
    k3, k4, key = jax.random.split(key, 3)
    x2 = jax.random.normal(k3, (10, 200), jnp.float32)
    w2, b2 = _make_params(k4, 200, 333)
    w2_p, b2_p = prepare_fc_params(w2, b2)
    out2 = jax.block_until_ready(
        fc_prelu(x2, w2_p, b2_p, alpha, 333,
                 tile_m=8, tile_n=128, tile_k=128, force_pallas=True))
    ref2 = fc_prelu_reference(x2, w2, b2, alpha)
    assert out2.shape == (10, 333)
    assert jnp.allclose(out2, ref2, atol=1e-5, rtol=1e-5), "mismatch (case 2)"

    # Case 3: bf16 weight/activation streaming, f32 accumulation, natural path
    # (large enough to skip the plain-JAX fallback; grid gets >=2 N blocks).
    k5, k6 = jax.random.split(key)
    x3 = jax.random.normal(k5, (16, 512), jnp.float32)
    w3, b3 = _make_params(k6, 512, 1024)
    w3_p, b3_p = prepare_fc_params(w3, b3, compute_dtype=jnp.bfloat16)
    out3 = jax.block_until_ready(fc_prelu(x3, w3_p, b3_p, alpha, 1024))
    ref3 = fc_prelu_reference(x3, w3, b3, alpha, compute_dtype=jnp.bfloat16)
    assert out3.shape == (16, 1024)
    assert jnp.allclose(out3, ref3, atol=2e-2, rtol=2e-2), "mismatch (case 3)"

    print("KERNEL_OK")
</pallas_src>

<mosaic_0001>
module attributes {stable_mosaic.version = 11 : i64} {
  func.func @_fc_prelu_kernel(%arg0: i32, %arg1: i32, %arg2: i32, %arg3: memref<1xf32, #tpu.memory_space<smem>>, %arg4: memref<8x128xf32, #tpu.memory_space<vmem>>, %arg5: memref<128x128xf32, #tpu.memory_space<vmem>>, %arg6: memref<1x128xf32, #tpu.memory_space<vmem>>, %arg7: memref<8x128xf32, #tpu.memory_space<vmem>>) attributes {dimension_semantics = [#tpu.dimension_semantics<parallel>, #tpu.dimension_semantics<parallel>, #tpu.dimension_semantics<arbitrary>], iteration_bounds = array<i64: 1, 1, 1>, scalar_prefetch = 0 : i64, scratch_operands = 0 : i64, tpu.core_type = #tpu.core_type<tc>, window_params = [{transform_indices = @transform_0, window_bounds = array<i64: 1>}, {transform_indices = @transform_1, window_bounds = array<i64: 8, 128>}, {transform_indices = @transform_2, window_bounds = array<i64: 128, 128>}, {transform_indices = @transform_3, window_bounds = array<i64: 1, 128>}, {transform_indices = @transform_4, window_bounds = array<i64: 8, 128>}]} {
    %c0 = arith.constant 0 : index
    %c0_0 = arith.constant 0 : index
    %0 = vector.load %arg4[%c0, %c0_0] : memref<8x128xf32, #tpu.memory_space<vmem>>, vector<8x128xf32>
    %c0_1 = arith.constant 0 : index
    %c0_2 = arith.constant 0 : index
    %1 = vector.load %arg5[%c0_1, %c0_2] : memref<128x128xf32, #tpu.memory_space<vmem>>, vector<128x128xf32>
    %cst = arith.constant dense<0.000000e+00> : vector<8x128xf32>
    %2 = tpu.matmul %0, %1, %cst {dimension_numbers = #tpu.dot_dimension_numbers<[1], [0], [0], [1], [0, 0, 1, 1], [], []>} : vector<8x128xf32>, vector<128x128xf32>, vector<8x128xf32> -> vector<8x128xf32>
    %c0_i32 = arith.constant 0 : i32
    %3 = arith.cmpi eq, %arg2, %c0_i32 : i32
    %4 = arith.extui %3 : i1 to i32
    %c0_i32_3 = arith.constant 0 : i32
    %5 = arith.cmpi ne, %4, %c0_i32_3 : i32
    scf.if %5 {
      %c0_8 = arith.constant 0 : index
      %c0_9 = arith.constant 0 : index
      %12 = vector.load %arg6[%c0_8, %c0_9] : memref<1x128xf32, #tpu.memory_space<vmem>>, vector<1x128xf32>
      %13 = vector.broadcast %12 : vector<1x128xf32> to vector<8x128xf32>
      %14 = arith.addf %2, %13 : vector<8x128xf32>
      %c0_10 = arith.constant 0 : index
      %c0_11 = arith.constant 0 : index
      %15 = vector.load %arg7[%c0_10, %c0_11] : memref<8x128xf32, #tpu.memory_space<vmem>>, vector<8x128xf32>
      tpu.vector_store %arg7[%c0_10, %c0_11], %14 {strides = array<i32>} : memref<8x128xf32, #tpu.memory_space<vmem>>, vector<8x128xf32>,
    } else {
    }
    %c0_i32_4 = arith.constant 0 : i32
    %6 = arith.cmpi sgt, %arg2, %c0_i32_4 : i32
    %7 = arith.extui %6 : i1 to i32
    %c0_i32_5 = arith.constant 0 : i32
    %8 = arith.cmpi ne, %7, %c0_i32_5 : i32
    scf.if %8 {
      %c0_8 = arith.constant 0 : index
      %c0_9 = arith.constant 0 : index
      %12 = vector.load %arg7[%c0_8, %c0_9] : memref<8x128xf32, #tpu.memory_space<vmem>>, vector<8x128xf32>
      %13 = arith.addf %12, %2 : vector<8x128xf32>
      %c0_10 = arith.constant 0 : index
      %c0_11 = arith.constant 0 : index
      %14 = vector.load %arg7[%c0_10, %c0_11] : memref<8x128xf32, #tpu.memory_space<vmem>>, vector<8x128xf32>
      tpu.vector_store %arg7[%c0_10, %c0_11], %13 {strides = array<i32>} : memref<8x128xf32, #tpu.memory_space<vmem>>, vector<8x128xf32>,
    } else {
    }
    %c0_i32_6 = arith.constant 0 : i32
    %9 = arith.cmpi eq, %arg2, %c0_i32_6 : i32
    %10 = arith.extui %9 : i1 to i32
    %c0_i32_7 = arith.constant 0 : i32
    %11 = arith.cmpi ne, %10, %c0_i32_7 : i32
    scf.if %11 {
      %c0_8 = arith.constant 0 : index
      %c0_9 = arith.constant 0 : index
      %12 = vector.load %arg7[%c0_8, %c0_9] : memref<8x128xf32, #tpu.memory_space<vmem>>, vector<8x128xf32>
      %cst_10 = arith.constant 0.000000e+00 : f32
      %13 = vector.broadcast %cst_10 : f32 to vector<8x128xf32>
      %14 = arith.cmpf ogt, %12, %13 : vector<8x128xf32>
      %c0_11 = arith.constant 0 : index
      %15 = memref.load %arg3[%c0_11] : memref<1xf32, #tpu.memory_space<smem>>
      %16 = vector.broadcast %15 : f32 to vector<8x128xf32>
      %17 = arith.mulf %16, %12 : vector<8x128xf32>
      %18 = arith.select %14, %12, %17 : vector<8x128xi1>, vector<8x128xf32>
      %c0_12 = arith.constant 0 : index
      %c0_13 = arith.constant 0 : index
      %19 = vector.load %arg7[%c0_12, %c0_13] : memref<8x128xf32, #tpu.memory_space<vmem>>, vector<8x128xf32>
      tpu.vector_store %arg7[%c0_12, %c0_13], %18 {strides = array<i32>} : memref<8x128xf32, #tpu.memory_space<vmem>>, vector<8x128xf32>,
    } else {
    }
    return
  }
  func.func @transform_0(%arg0: i32, %arg1: i32, %arg2: i32) -> i32 {
    %c0_i32 = arith.constant 0 : i32
    %c0_i32_0 = arith.constant 0 : i32
    return %c0_i32 : i32
  }
  func.func @transform_1(%arg0: i32, %arg1: i32, %arg2: i32) -> (i32, i32) {
    %c0_i32 = arith.constant 0 : i32
    return %arg0, %arg2 : i32, i32
  }
  func.func @transform_2(%arg0: i32, %arg1: i32, %arg2: i32) -> (i32, i32) {
    %c0_i32 = arith.constant 0 : i32
    return %arg2, %arg1 : i32, i32
  }
  func.func @transform_3(%arg0: i32, %arg1: i32, %arg2: i32) -> (i32, i32) {
    %c0_i32 = arith.constant 0 : i32
    %c0_i32_0 = arith.constant 0 : i32
    return %c0_i32, %arg1 : i32, i32
  }
  func.func @transform_4(%arg0: i32, %arg1: i32, %arg2: i32) -> (i32, i32) {
    %c0_i32 = arith.constant 0 : i32
    return %arg0, %arg1 : i32, i32
  }
}

</mosaic_0001>

<llo_original>
// kernel: tpu_custom_call.1
$region0: #{tpu_custom_call.1}
  #allocation0 [shape = 'u32[]', space=smem, size = 0x4, offset = 0x4, fixed_abs, tag = 'smem constant byte address 0x4 - core index']
  #allocation1 [shape = 'u32[144,128]{1,0:T(1,128)}', space=vmem, size = 0x12000, scoped, tag = 'internal scratch']
  #allocation2 [shape = 'f32[1]{0:T(128)S(6)}', space=smem, size = 0x200, scoped, tag = 'scoped memory for tpu_custom_call.1']
  %s0 = inlined_call_operand.<no memory space> [shape: f32[1], index: 0, kind: input, shape index: {}]
  %s1 = inlined_call_operand.hbm [shape: f32[8,128], index: 1, kind: input, shape index: {}]
  %s2 = inlined_call_operand.hbm [shape: f32[128,128], index: 2, kind: input, shape index: {}]
  %s3 = inlined_call_operand.vmem [shape: f32[1,128], index: 3, kind: input, shape index: {}]
  %s4 = inlined_call_operand.hbm [shape: f32[8,128], index: 4, kind: output, shape index: {}]
  %s5 = sld [smem:[#allocation0]]
  $region46: #{tpu_custom_call.1} parent=0
    _
  %s7 = ssub.s32 1, %s5
  %s8 = scalar_select 0, %s7, %s5
  %9 = sst [smem:[#allocation2]] %s0
  $region1: #{tpu_custom_call.1} parent=0
    #allocation3 [shape = 'u8[4096]{0}', space=vmem, size = 0x1000, scoped, tag = 'input window, operand 1, single buffered']
    #allocation4 [shape = 's32[1]{0}', space=sflag, size = 0x4, scoped, tag = 'scoped memory for tpu_custom_call.1']
    #allocation5 [shape = 's32[1]{0}', space=sflag, size = 0x4, scoped, tag = 'scoped memory for tpu_custom_call.1']
    #allocation6 [shape = 'u8[65536]{0}', space=vmem, size = 0x10000, scoped, tag = 'input window, operand 2, single buffered']
    #allocation7 [shape = 's32[1]{0}', space=sflag, size = 0x4, scoped, tag = 'scoped memory for tpu_custom_call.1']
    #allocation8 [shape = 'u8[4096]{0}', space=vmem, size = 0x1000, scoped, tag = 'output window, operand 0, single buffered']
    %10 = vsyncpa [#allocation4], 0
    %11 = vsyncpa [#allocation7], 0
    %12 = vsyncpa [#allocation5], 0
    // Predicated region
    $region2: #{tpu_custom_call.1} parent=1 // pred_check
      _
    $region3: #{tpu_custom_call.1} parent=1 // pred_check_branch
      %14 = sbr.rel (0) target = $region5
    $region4: #{tpu_custom_call.1} parent=1 // pred_region
      _
    $region5: #{tpu_custom_call.1} parent=1 // pred_fallthru
      _
    // Predicated region
    $region6: #{tpu_custom_call.1} parent=1 // pred_check
      _
    $region7: #{tpu_custom_call.1} parent=1 // pred_check_branch
      %16 = sbr.rel (0) target = $region9
    $region8: #{tpu_custom_call.1} parent=1 // pred_region
      %s18 = ssub.s32 128, 128
      %19 = vsyncadd [#allocation4], %s18
      %s21 = sshll.u32 [#allocation3], 4
      %s22 = int_to_ptr.vmem [resolvable:$true] %s21
      %24 = dma.hbm_to_vmem [thread:$0]  %s1, 128, %s22, [#allocation4]
    $region9: #{tpu_custom_call.1} parent=1 // pred_fallthru
      _
    // Predicated region
    $region10: #{tpu_custom_call.1} parent=1 // pred_check
      _
    $region11: #{tpu_custom_call.1} parent=1 // pred_check_branch
      %26 = sbr.rel (0) target = $region13
    $region12: #{tpu_custom_call.1} parent=1 // pred_region
      %s28 = ssub.s32 2048, 2048
      %29 = vsyncadd [#allocation7], %s28
      %s30 = sshll.u32 [#allocation6], 4
      %s31 = int_to_ptr.vmem [resolvable:$true] %s30
      %36 = dma.hbm_to_vmem [thread:$0]  %s2, 2048, %s31, [#allocation7], 128, 128, 8
    $region13: #{tpu_custom_call.1} parent=1 // pred_fallthru
      _
    // Predicated region
    $region14: #{tpu_custom_call.1} parent=1 // pred_check
      _
    $region15: #{tpu_custom_call.1} parent=1 // pred_check_branch
      %38 = sbr.rel (0) target = $region17
    $region16: #{tpu_custom_call.1} parent=1 // pred_region
      _
    $region17: #{tpu_custom_call.1} parent=1 // pred_fallthru
      _
    // Predicated region
    $region18: #{tpu_custom_call.1} parent=1 // pred_check
      _
    $region19: #{tpu_custom_call.1} parent=1 // pred_check_branch
      %40 = sbr.rel (0) target = $region21
    $region20: #{tpu_custom_call.1} parent=1 // pred_region
      %41 = dma.done [#allocation4], 128
    $region21: #{tpu_custom_call.1} parent=1 // pred_fallthru
      _
    // Predicated region
    $region22: #{tpu_custom_call.1} parent=1 // pred_check
      _
    $region23: #{tpu_custom_call.1} parent=1 // pred_check_branch
      %43 = sbr.rel (0) target = $region25
    $region24: #{tpu_custom_call.1} parent=1 // pred_region
      %44 = dma.done [#allocation7], 2048
    $region25: #{tpu_custom_call.1} parent=1 // pred_fallthru
      _
    %v45 = vld [vmem:[#allocation3] sm:$0xff]
    %v46 = vld [vmem:[#allocation6] sm:$0xff]
    %v47 = vld [vmem:[#allocation6 + $0x8] sm:$0xff]
    %v48 = vld [vmem:[#allocation6 + $0x10] sm:$0xff]
    %v49 = vld [vmem:[#allocation6 + $0x18] sm:$0xff]
    %v50 = vld [vmem:[#allocation6 + $0x20] sm:$0xff]
    %v51 = vld [vmem:[#allocation6 + $0x28] sm:$0xff]
    %v52 = vld [vmem:[#allocation6 + $0x30] sm:$0xff]
    %v53 = vld [vmem:[#allocation6 + $0x38] sm:$0xff]
    %v54 = vld [vmem:[#allocation6 + $0x40] sm:$0xff]
    %v55 = vld [vmem:[#allocation6 + $0x48] sm:$0xff]
    %v56 = vld [vmem:[#allocation6 + $0x50] sm:$0xff]
    %v57 = vld [vmem:[#allocation6 + $0x58] sm:$0xff]
    %v58 = vld [vmem:[#allocation6 + $0x60] sm:$0xff]
    %v59 = vld [vmem:[#allocation6 + $0x68] sm:$0xff]
    %v60 = vld [vmem:[#allocation6 + $0x70] sm:$0xff]
    %v61 = vld [vmem:[#allocation6 + $0x78] sm:$0xff]
    %62 = vmatprep.subr.mxu0 0.0
    %63 = vmatpush1.msra.mxu0 %v46
    %64 = vmatprep.subr.mxu0 0.0
    %65 = vmatpush1.msra.mxu0 %v47
    %66 = vmatprep.subr.mxu0 0.0
    %67 = vmatpush1.msra.mxu0 %v48
    %68 = vmatprep.subr.mxu0 0.0
    %69 = vmatpush1.msra.mxu0 %v49
    %70 = vmatprep.subr.mxu0 0.0
    %71 = vmatpush1.msra.mxu0 %v50
    %72 = vmatprep.subr.mxu0 0.0
    %73 = vmatpush1.msra.mxu0 %v51
    %74 = vmatprep.subr.mxu0 0.0
    %75 = vmatpush1.msra.mxu0 %v52
    %76 = vmatprep.subr.mxu0 0.0
    %77 = vmatpush1.msra.mxu0 %v53
    %78 = vmatprep.subr.mxu0 0.0
    %79 = vmatpush1.msra.mxu0 %v54
    %80 = vmatprep.subr.mxu0 0.0
    %81 = vmatpush1.msra.mxu0 %v55
    %82 = vmatprep.subr.mxu0 0.0
    %83 = vmatpush1.msra.mxu0 %v56
    %84 = vmatprep.subr.mxu0 0.0
    %85 = vmatpush1.msra.mxu0 %v57
    %86 = vmatprep.subr.mxu0 0.0
    %87 = vmatpush1.msra.mxu0 %v58
    %88 = vmatprep.subr.mxu0 0.0
    %89 = vmatpush1.msra.mxu0 %v59
    %90 = vmatprep.subr.mxu0 0.0
    %91 = vmatpush1.msra.mxu0 %v60
    %92 = vmatprep.subr.mxu0 0.0
    %93 = vmatpush1.msra.mxu0 %v61
    %94 = vmatprep.subr.mxu0 0.0
    %95 = vmatpush1.msra.mxu0 0.0
    %96 = vmatprep.subr.mxu0 0.0
    %97 = vmatpush1.msra.mxu0 0.0
    %98 = vmatprep.subr.mxu0 0.0
    %99 = vmatpush1.msra.mxu0 0.0
    %100 = vmatprep.subr.mxu0 0.0
    %101 = vmatpush1.msra.mxu0 0.0
    %102 = vmatprep.subr.mxu0 0.0
    %103 = vmatpush1.msra.mxu0 0.0
    %104 = vmatprep.subr.mxu0 0.0
    %105 = vmatpush1.msra.mxu0 0.0
    %106 = vmatprep.subr.mxu0 0.0
    %107 = vmatpush1.msra.mxu0 0.0
    %108 = vmatprep.subr.mxu0 0.0
    %109 = vmatpush1.msra.mxu0 0.0
    %110 = vmatprep.subr.mxu0 0.0
    %111 = vmatpush1.msra.mxu0 0.0
    %112 = vmatprep.subr.mxu0 0.0
    %113 = vmatpush1.msra.mxu0 0.0
    %114 = vmatprep.subr.mxu0 0.0
    %115 = vmatpush1.msra.mxu0 0.0
    %116 = vmatprep.subr.mxu0 0.0
    %117 = vmatpush1.msra.mxu0 0.0
    %118 = vmatprep.subr.mxu0 0.0
    %119 = vmatpush1.msra.mxu0 0.0
    %120 = vmatprep.subr.mxu0 0.0
    %121 = vmatpush1.msra.mxu0 0.0
    %122 = vmatprep.subr.mxu0 0.0
    %123 = vmatpush1.msra.mxu0 0.0
    %124 = vmatprep.subr.mxu0 0.0
    %125 = vmatpush1.msra.mxu0 0.0
    %126 = vmatprep.mubr.f32.mxu0 0.0
    %127 = vmatmul.mubr.f32.gmra.mrb[0].mxu0 %v45
    %v128 = vpop.f32.mrb[0].mxu0
    %v129 = vadd.f32 0.0, %v128
    %v130 = vpop.f32.mrb[0].mxu0
    %131 = vdwg.mxu0
    %p132 = scmp.eq.s32.totalorder 0, 0
    // Predicated region
    $region26: #{tpu_custom_call.1} parent=1 // pred_check
      %p133 = pneg %p132
    $region27: #{tpu_custom_call.1} parent=1 // pred_check_branch
      %135 = sbr.rel (%p133) target = $region29
    $region28: #{tpu_custom_call.1} parent=1 // pred_region
      %v136 = vld [vmem:[%s3] sm:$0x1]
      %v138 = vlaneseq
      %v139 = vshrl.u32 %v138, 7
      %v140 = vsub.s32 0, %v139
      %v141 = vrot.slane %v136, %v140
      %v143 = vadd.f32 %v129, %v141
      %144 = vst [vmem:[#allocation8] sm:$0xff] %v143
    $region29: #{tpu_custom_call.1} parent=1 // pred_fallthru
      _
    %p145 = scmp.gt.s32.totalorder 0, 0
    // Predicated region
    $region30: #{tpu_custom_call.1} parent=1 // pred_check
      %p146 = pneg %p145
    $region31: #{tpu_custom_call.1} parent=1 // pred_check_branch
      %148 = sbr.rel (%p146) target = $region33
    $region32: #{tpu_custom_call.1} parent=1 // pred_region
      %v149 = vld [vmem:[#allocation8] sm:$0xff]
      %v150 = vadd.f32 %v149, %v129
      %151 = vst [vmem:[#allocation8] sm:$0xff] %v150
    $region33: #{tpu_custom_call.1} parent=1 // pred_fallthru
      _
    // Predicated region
    $region34: #{tpu_custom_call.1} parent=1 // pred_check
      %p152 = pneg %p132
    $region35: #{tpu_custom_call.1} parent=1 // pred_check_branch
      %154 = sbr.rel (%p152) target = $region37
    $region36: #{tpu_custom_call.1} parent=1 // pred_region
      %v155 = vld [vmem:[#allocation8] sm:$0xff]
      %vm156 = vcmp.gt.f32.partialorder %v155, 0.0
      %s157 = sld [smem:[#allocation2]]
      %v158 = vstv %s157
      %v159 = vmul.f32 %v158, %v155
      %v160 = vsel %vm156, %v155, %v159
      %161 = vst [vmem:[#allocation8] sm:$0xff] %v160
    $region37: #{tpu_custom_call.1} parent=1 // pred_fallthru
      _
    // Predicated region
    $region38: #{tpu_custom_call.1} parent=1 // pred_check
      _
    $region39: #{tpu_custom_call.1} parent=1 // pred_check_branch
      %163 = sbr.rel (0) target = $region41
    $region40: #{tpu_custom_call.1} parent=1 // pred_region
      %s165 = ssub.s32 128, 128
      %166 = vsyncadd [#allocation5], %s165
      %s168 = sshll.u32 [#allocation8], 4
      %s169 = int_to_ptr.vmem [resolvable:$true] %s168
      %171 = dma.vmem_to_hbm [thread:$0]  %s169, 128, %s4, [#allocation5]
    $region41: #{tpu_custom_call.1} parent=1 // pred_fallthru
      _
    // Predicated region
    $region42: #{tpu_custom_call.1} parent=1 // pred_check
      _
    $region43: #{tpu_custom_call.1} parent=1 // pred_check_branch
      %173 = sbr.rel (0) target = $region45
    $region44: #{tpu_custom_call.1} parent=1 // pred_region
      %174 = dma.done [#allocation5], 128
    $region45: #{tpu_custom_call.1} parent=1 // pred_fallthru
      _
    %175 = vsyncpa [#allocation4], 1
    %176 = vsyncpa [#allocation7], 1
    %177 = vsyncpa [#allocation5], 1

</llo_original>
